<compile_context>
chip_gen: v7x
topology: tpu7x:2x2x1
jax: 0.10.0
libtpu: 0.0.40
codegen_flags: <defaults>
</compile_context>

<pallas_src>
import math
import functools

import jax
import jax.numpy as jnp
from jax.experimental import pallas as pl
from jax.experimental.pallas import tpu as pltpu

LN_EPS = 1e-12                 # BERT-style LayerNorm eps
_MASK_VALUE = -1e30            # scores are f32; safe large-negative mask
_BLK_TOKENS = 256              # attention token tile (q and kv)
_MAX_DENSE_BLK = 512           # dense-kernel token tile upper bound

_VMEM_LIMIT_CACHE = None


def _vmem_limit_bytes():
    """~3/4 of physical VMEM: ~48 MiB on v7x (64 MiB), ~96-112 MiB on v5e/v6e."""
    global _VMEM_LIMIT_CACHE
    if _VMEM_LIMIT_CACHE is None:
        limit = 48 * 1024 * 1024
        try:
            cap = getattr(pltpu.get_tpu_info(), "vmem_capacity_bytes", None)
            if cap:
                limit = min((int(cap) * 3) // 4, 112 * 1024 * 1024)
        except Exception:
            pass
        _VMEM_LIMIT_CACHE = limit
    return _VMEM_LIMIT_CACHE


def _round_up(x, m):
    return (x + m - 1) // m * m


# ---------------------------------------------------------------------------
# Kernel: weight-resident dense  (x @ W + b, optional fused GELU)
# ---------------------------------------------------------------------------
def _dense_kernel(x_ref, w_ref, b_ref, o_ref, *, activation):
    h = jnp.dot(x_ref[...], w_ref[...], preferred_element_type=jnp.float32)
    h = h + b_ref[...].astype(jnp.float32)
    if activation == "gelu":
        # TODO(synk): torch nn.GELU() default is exact erf GELU; tanh
        # approximation (max abs deviation ~1e-3) used for guaranteed lowering.
        c = math.sqrt(2.0 / math.pi)
        h = 0.5 * h * (1.0 + jnp.tanh(c * (h + 0.044715 * h * h * h)))
    o_ref[...] = h.astype(o_ref.dtype)


def _dense(x, w, b, *, block_m, activation=None):
    M, K = x.shape
    N = w.shape[1]
    cost = pl.CostEstimate(
        flops=2 * M * K * N,
        transcendentals=M * N if activation == "gelu" else 0,
        bytes_accessed=(M * K + M * N) * x.dtype.itemsize
        + K * N * w.dtype.itemsize + N * 4)
    return pl.pallas_call(
        functools.partial(_dense_kernel, activation=activation),
        out_shape=jax.ShapeDtypeStruct((M, N), x.dtype),
        grid_spec=pltpu.PrefetchScalarGridSpec(
            num_scalar_prefetch=0,
            grid=(M // block_m,),
            in_specs=[
                pl.BlockSpec((block_m, K), lambda i: (i, 0)),
                pl.BlockSpec((K, N), lambda i: (0, 0)),    # weight resident
                pl.BlockSpec((1, N), lambda i: (0, 0)),    # bias resident
            ],
            out_specs=pl.BlockSpec((block_m, N), lambda i: (i, 0)),
        ),
        compiler_params=pltpu.CompilerParams(
            dimension_semantics=("parallel",),
            vmem_limit_bytes=_vmem_limit_bytes()),
        cost_estimate=cost,
    )(x, w, b)


# ---------------------------------------------------------------------------
# Kernel: weight-resident dense + bias + residual + LayerNorm (post-norm)
# ---------------------------------------------------------------------------
def _dense_res_ln_kernel(x_ref, w_ref, b_ref, res_ref, g_ref, beta_ref, o_ref,
                         *, eps):
    h = jnp.dot(x_ref[...], w_ref[...], preferred_element_type=jnp.float32)
    h = h + b_ref[...].astype(jnp.float32) + res_ref[...].astype(jnp.float32)
    mu = jnp.mean(h, axis=-1, keepdims=True)
    var = jnp.mean(jnp.square(h - mu), axis=-1, keepdims=True)
    nh = (h - mu) * jax.lax.rsqrt(var + eps)
    o_ref[...] = (nh * g_ref[...].astype(jnp.float32)
                  + beta_ref[...].astype(jnp.float32)).astype(o_ref.dtype)


def _dense_residual_ln(x, w, b, residual, gamma, beta, *, block_m, eps=LN_EPS):
    M, K = x.shape
    N = w.shape[1]
    cost = pl.CostEstimate(
        flops=2 * M * K * N + 8 * M * N,
        transcendentals=M,
        bytes_accessed=(M * K + 2 * M * N) * x.dtype.itemsize
        + K * N * w.dtype.itemsize + 3 * N * 4)
    return pl.pallas_call(
        functools.partial(_dense_res_ln_kernel, eps=eps),
        out_shape=jax.ShapeDtypeStruct((M, N), x.dtype),
        grid_spec=pltpu.PrefetchScalarGridSpec(
            num_scalar_prefetch=0,
            grid=(M // block_m,),
            in_specs=[
                pl.BlockSpec((block_m, K), lambda i: (i, 0)),
                pl.BlockSpec((K, N), lambda i: (0, 0)),    # weight resident
                pl.BlockSpec((1, N), lambda i: (0, 0)),    # bias resident
                pl.BlockSpec((block_m, N), lambda i: (i, 0)),  # residual
                pl.BlockSpec((1, N), lambda i: (0, 0)),    # gamma resident
                pl.BlockSpec((1, N), lambda i: (0, 0)),    # beta resident
            ],
            out_specs=pl.BlockSpec((block_m, N), lambda i: (i, 0)),
        ),
        compiler_params=pltpu.CompilerParams(
            dimension_semantics=("parallel",),
            vmem_limit_bytes=_vmem_limit_bytes()),
        cost_estimate=cost,
    )(x, w, b, residual, gamma, beta)


# ---------------------------------------------------------------------------
# Kernel: flash-style varlen attention with a compacted kv grid.
# ---------------------------------------------------------------------------
def _flash_attn_kernel(kvs_ref, kvl_ref, segq_ref, segk_ref, q_ref, k_ref, v_ref,
                       o_ref, m_scr, l_scr, acc_scr, q_scr,
                       *, num_heads, head_dim):
    qi = pl.program_id(0)
    ki = pl.program_id(1)

    @pl.when(ki == 0)
    def _init():
        m_scr[...] = jnp.full(m_scr.shape, _MASK_VALUE, m_scr.dtype)
        l_scr[...] = jnp.zeros(l_scr.shape, l_scr.dtype)
        acc_scr[...] = jnp.zeros(acc_scr.shape, acc_scr.dtype)
        # Unpack the resident Q tile into head-major scratch once per q tile.
        q = q_ref[...]
        for h in range(num_heads):
            q_scr[h] = q[:, h * head_dim:(h + 1) * head_dim]

    # Compute only for kv steps inside this q tile's compact kv range; steps
    # beyond it are clamped to the previous block index (no extra DMA).
    @pl.when(ki < kvl_ref[qi])
    def _compute():
        segq = segq_ref[...]                              # (blk, 1) int32
        segk = segk_ref[0]                                # (1, blk) int32, lane-dense
        mask = segq == segk                               # (blk, blk) bool
        k = k_ref[...]
        v = v_ref[...]
        for h in range(num_heads):
            sl = slice(h * head_dim, (h + 1) * head_dim)
            s = jax.lax.dot_general(
                q_scr[h], k[:, sl], (((1,), (1,)), ((), ())),
                preferred_element_type=jnp.float32)       # (blk, blk) f32
            s = jnp.where(mask, s, _MASK_VALUE)
            m_prev = m_scr[h]                             # (blk, 1)
            m_new = jnp.maximum(m_prev, jnp.max(s, axis=-1, keepdims=True))
            alpha = jnp.exp(m_prev - m_new)
            # No post-exp mask: every row sees its own (diagonal) valid column
            # eventually, so stale fully-masked contributions are annihilated
            # by alpha = exp(-1e30 - m_new) = 0.
            p = jnp.exp(s - m_new)
            l_scr[h] = alpha * l_scr[h] + jnp.sum(p, axis=-1, keepdims=True)
            acc_scr[h] = alpha * acc_scr[h] + jax.lax.dot(
                p.astype(v.dtype), v[:, sl], preferred_element_type=jnp.float32)
            m_scr[h] = m_new

    @pl.when(ki == pl.num_programs(1) - 1)
    def _finalize():
        outs = []
        for h in range(num_heads):
            inv_l = pl.reciprocal(l_scr[h], approx=True)  # (blk, 1)
            outs.append(acc_scr[h] * inv_l)
        # single lane-dense (blk, dim) store
        o_ref[...] = jnp.concatenate(outs, axis=-1).astype(o_ref.dtype)


def _flash_attention(kv_start, kv_len, seg_col, seg_rows, qkv, *, num_heads,
                     head_dim, dim, blk):
    padded_nnz = qkv.shape[0]
    nt = padded_nnz // blk
    max_kv = int(max(kv_len))
    pairs = int(sum(kv_len))

    kvs = jnp.asarray(kv_start, dtype=jnp.int32)
    kvl = jnp.asarray(kv_len, dtype=jnp.int32)

    def kv_block(qi, ki, kvs_ref, kvl_ref):
        # clamp: out-of-range steps revisit the last block -> no new DMA
        return kvs_ref[qi] + jnp.minimum(ki, kvl_ref[qi] - 1)

    itemsize = qkv.dtype.itemsize
    cost = pl.CostEstimate(
        flops=4 * pairs * blk * blk * head_dim * num_heads,
        transcendentals=pairs * blk * blk * num_heads,
        bytes_accessed=(nt * blk * dim + 2 * pairs * blk * dim
                        + padded_nnz * dim) * itemsize
        + (padded_nnz + pairs * blk) * 4)

    grid_spec = pltpu.PrefetchScalarGridSpec(
        num_scalar_prefetch=2,                 # kv_start, kv_len in SMEM
        grid=(nt, max_kv),
        in_specs=[
            # q-side segment ids: resident across kv steps
            pl.BlockSpec((blk, 1), lambda qi, ki, s, l: (qi, 0)),
            # kv-side segment ids: lane-dense (1, 1, blk) blocks
            pl.BlockSpec((1, 1, blk),
                         lambda qi, ki, s, l: (kv_block(qi, ki, s, l), 0, 0)),
            # Q / K / V columns of the fused (tokens, 3*dim) QKV slab
            pl.BlockSpec((blk, dim), lambda qi, ki, s, l: (qi, 0)),
            pl.BlockSpec((blk, dim),
                         lambda qi, ki, s, l: (kv_block(qi, ki, s, l), 1)),
            pl.BlockSpec((blk, dim),
                         lambda qi, ki, s, l: (kv_block(qi, ki, s, l), 2)),
        ],
        out_specs=pl.BlockSpec((blk, dim), lambda qi, ki, s, l: (qi, 0)),
        scratch_shapes=[
            pltpu.VMEM((num_heads, blk, 1), jnp.float32),          # m
            pltpu.VMEM((num_heads, blk, 1), jnp.float32),          # l
            pltpu.VMEM((num_heads, blk, head_dim), jnp.float32),   # acc
            pltpu.VMEM((num_heads, blk, head_dim), qkv.dtype),     # head-major Q
        ],
    )
    kernel = functools.partial(_flash_attn_kernel,
                               num_heads=num_heads, head_dim=head_dim)
    return pl.pallas_call(
        kernel,
        out_shape=jax.ShapeDtypeStruct((padded_nnz, dim), qkv.dtype),
        grid_spec=grid_spec,
        compiler_params=pltpu.CompilerParams(
            dimension_semantics=("parallel", "arbitrary"),
            vmem_limit_bytes=_vmem_limit_bytes()),
        cost_estimate=cost,
    )(kvs, kvl, seg_col, seg_rows, qkv, qkv, qkv)


# ---------------------------------------------------------------------------
# Static per-q-tile kv ranges (tokens are packed in batch order, so each q
# tile overlaps a small contiguous range of kv tiles — independent of the
# attention_mask values under the sentinel-segment scheme).
# ---------------------------------------------------------------------------
def _static_kv_ranges(B, S, blk, padded_nnz):
    nt = padded_nnz // blk
    nnz = B * S
    kv_start, kv_len = [], []
    for qi in range(nt):
        lo = qi * blk
        hi = min((qi + 1) * blk, padded_nnz) - 1
        starts, ends = [], []
        real_hi = min(hi, nnz - 1)
        if lo <= real_hi:                       # tokens belonging to a batch
            b_min = lo // S
            b_max = real_hi // S
            starts.append((b_min * S) // blk)
            ends.append(((b_max + 1) * S - 1) // blk)
        if hi >= nnz:                           # trailing pad: diag tile only
            starts.append(qi)
            ends.append(qi)
        s, e = min(starts), max(ends)
        kv_start.append(s)
        kv_len.append(e - s + 1)
    return kv_start, kv_len


# ---------------------------------------------------------------------------
# One post-norm FlexBERT layer (packed token layout)
# ---------------------------------------------------------------------------
def _flexbert_postnorm_layer(x, seg_col, seg_rows, kv_start, kv_len, p, *,
                             num_heads, blk_attn, blk_dense):
    _, dim = x.shape
    head_dim = dim // num_heads

    qkv = _dense(x, p["Wqkv"], p["bqkv"], block_m=blk_dense)       # (nnz, 3*dim)
    ctx = _flash_attention(kv_start, kv_len, seg_col, seg_rows, qkv,
                           num_heads=num_heads, head_dim=head_dim,
                           dim=dim, blk=blk_attn)                   # (nnz, dim)
    # post-norm attention block: LN(h + Wo(ctx)) fused into one kernel
    attn_out = _dense_residual_ln(ctx, p["Wo"], p["bo"], x,
                                  p["attn_g"], p["attn_b"], block_m=blk_dense)
    # MLP: GELU(Wi(x)) fused; LN(attn_out + Wmo(.)) fused
    h = _dense(attn_out, p["Wi"], p["bi"], block_m=blk_dense, activation="gelu")
    return _dense_residual_ln(h, p["Wmo"], p["bmo"], attn_out,
                              p["mlp_g"], p["mlp_b"], block_m=blk_dense)


# ---------------------------------------------------------------------------
# Encoder (stack of layers) on the padded interface
# ---------------------------------------------------------------------------
def flexbert_padded_encoder(hidden_states, attention_mask, layer_params, *,
                            num_heads, compute_dtype=jnp.bfloat16):
    B, S, D = hidden_states.shape
    assert D % 128 == 0, "hidden dim must be a multiple of 128 (lane width)"
    assert D % num_heads == 0
    nnz = B * S

    x = hidden_states.reshape(nnz, D).astype(compute_dtype)

    # segment ids: valid token -> batch index; padded token -> unique sentinel
    valid = attention_mask.reshape(nnz) > 0
    batch_ids = jnp.repeat(jnp.arange(B, dtype=jnp.int32), S)
    flat_idx = jnp.arange(nnz, dtype=jnp.int32)
    seg = jnp.where(valid, batch_ids, jnp.int32(B) + flat_idx)

    blk_attn = min(_BLK_TOKENS, _round_up(nnz, 8))
    padded_nnz = _round_up(nnz, blk_attn)
    pad = padded_nnz - nnz
    if pad:
        x = jnp.concatenate([x, jnp.zeros((pad, D), compute_dtype)], axis=0)
        seg = jnp.concatenate(
            [seg, jnp.int32(B + nnz) + jnp.arange(pad, dtype=jnp.int32)])

    nt = padded_nnz // blk_attn
    seg = seg.astype(jnp.int32)
    seg_col = seg[:, None]                          # (padded_nnz, 1) q side
    seg_rows = seg.reshape(nt, 1, blk_attn)         # lane-dense kv side

    kv_start, kv_len = _static_kv_ranges(B, S, blk_attn, padded_nnz)

    blk_dense = blk_attn
    while blk_dense * 2 <= _MAX_DENSE_BLK and padded_nnz % (blk_dense * 2) == 0:
        blk_dense *= 2

    for p in layer_params:
        x = _flexbert_postnorm_layer(x, seg_col, seg_rows, kv_start, kv_len, p,
                                     num_heads=num_heads, blk_attn=blk_attn,
                                     blk_dense=blk_dense)

    return x[:nnz].reshape(B, S, D).astype(hidden_states.dtype)


# ---------------------------------------------------------------------------
# Deterministic parameter init + bf16 preparation (Q-scale folded into Wqkv)
# ---------------------------------------------------------------------------
def init_layer_params(key, dim, num_heads, intermediate):
    ks = jax.random.split(key, 4)
    std = 0.02
    return {
        "Wqkv": jax.random.normal(ks[0], (dim, 3 * dim), jnp.float32) * std,
        "bqkv": jnp.zeros((1, 3 * dim), jnp.float32),
        "Wo": jax.random.normal(ks[1], (dim, dim), jnp.float32) * std,
        "bo": jnp.zeros((1, dim), jnp.float32),
        "attn_g": jnp.ones((1, dim), jnp.float32),
        "attn_b": jnp.zeros((1, dim), jnp.float32),
        "Wi": jax.random.normal(ks[2], (dim, intermediate), jnp.float32) * std,
        "bi": jnp.zeros((1, intermediate), jnp.float32),
        "Wmo": jax.random.normal(ks[3], (intermediate, dim), jnp.float32) * std,
        "bmo": jnp.zeros((1, dim), jnp.float32),
        "mlp_g": jnp.ones((1, dim), jnp.float32),
        "mlp_b": jnp.zeros((1, dim), jnp.float32),
    }


def prepare_layer_params(p, *, num_heads, compute_dtype=jnp.bfloat16):
    dim = p["Wo"].shape[0]
    head_dim = dim // num_heads
    scale = 1.0 / math.sqrt(head_dim)
    # fold 1/sqrt(head_dim) into the Q columns of Wqkv / bqkv (trace-time)
    col_scale = jnp.concatenate([jnp.full((dim,), scale, jnp.float32),
                                 jnp.ones((2 * dim,), jnp.float32)])[None, :]
    return {
        "Wqkv": (p["Wqkv"] * col_scale).astype(compute_dtype),
        "bqkv": (p["bqkv"] * col_scale).astype(jnp.float32),
        "Wo": p["Wo"].astype(compute_dtype),
        "bo": p["bo"].astype(jnp.float32),
        "attn_g": p["attn_g"].astype(jnp.float32),
        "attn_b": p["attn_b"].astype(jnp.float32),
        "Wi": p["Wi"].astype(compute_dtype),
        "bi": p["bi"].astype(jnp.float32),
        "Wmo": p["Wmo"].astype(compute_dtype),
        "bmo": p["bmo"].astype(jnp.float32),
        "mlp_g": p["mlp_g"].astype(jnp.float32),
        "mlp_b": p["mlp_b"].astype(jnp.float32),
    }


if __name__ == "__main__":
    dim = 128
    num_heads = 4
    intermediate = 256
    num_layers = 2
    batch = 2
    max_seqlen = 16

    seqlens = jnp.array([12, 9], dtype=jnp.int32)
    attention_mask = (jnp.arange(max_seqlen)[None, :] < seqlens[:, None]).astype(jnp.int32)

    key = jax.random.PRNGKey(0)
    keys = jax.random.split(key, num_layers + 1)
    hidden_states = jax.random.normal(keys[0], (batch, max_seqlen, dim), jnp.float32)
    layer_params = [
        prepare_layer_params(init_layer_params(keys[i + 1], dim, num_heads, intermediate),
                             num_heads=num_heads)
        for i in range(num_layers)
    ]

    out = flexbert_padded_encoder(hidden_states, attention_mask, layer_params,
                                  num_heads=num_heads)
    out = jax.block_until_ready(out)
    assert out.shape == (batch, max_seqlen, dim)
    assert bool(jnp.all(jnp.isfinite(out)))
    print("KERNEL_OK")
</pallas_src>

<mosaic_0001>
module attributes {stable_mosaic.version = 11 : i64} {
  func.func @_dense_kernel(%arg0: i32, %arg1: memref<32x128xbf16, #tpu.memory_space<vmem>>, %arg2: memref<128x384xbf16, #tpu.memory_space<vmem>>, %arg3: memref<1x384xf32, #tpu.memory_space<vmem>>, %arg4: memref<32x384xbf16, #tpu.memory_space<vmem>>) attributes {dimension_semantics = [#tpu.dimension_semantics<parallel>], iteration_bounds = array<i64: 1>, scalar_prefetch = 0 : i64, scratch_operands = 0 : i64, tpu.core_type = #tpu.core_type<tc>, window_params = [{transform_indices = @transform_0, window_bounds = array<i64: 32, 128>}, {pipeline_mode = #tpu.pipeline_mode<synchronous>, transform_indices = @transform_1, window_bounds = array<i64: 128, 384>}, {pipeline_mode = #tpu.pipeline_mode<synchronous>, transform_indices = @transform_2, window_bounds = array<i64: 1, 384>}, {transform_indices = @transform_3, window_bounds = array<i64: 32, 384>}]} {
    %c0 = arith.constant 0 : index
    %c0_0 = arith.constant 0 : index
    %0 = vector.load %arg1[%c0, %c0_0] : memref<32x128xbf16, #tpu.memory_space<vmem>>, vector<32x128xbf16>
    %c0_1 = arith.constant 0 : index
    %c0_2 = arith.constant 0 : index
    %1 = vector.load %arg2[%c0_1, %c0_2] : memref<128x384xbf16, #tpu.memory_space<vmem>>, vector<128x384xbf16>
    %cst = arith.constant dense<0.000000e+00> : vector<32x384xf32>
    %2 = tpu.matmul %0, %1, %cst {dimension_numbers = #tpu.dot_dimension_numbers<[1], [0], [0], [1], [0, 0, 1, 1], [], []>} : vector<32x128xbf16>, vector<128x384xbf16>, vector<32x384xf32> -> vector<32x384xf32>
    %c0_3 = arith.constant 0 : index
    %c0_4 = arith.constant 0 : index
    %3 = vector.load %arg3[%c0_3, %c0_4] : memref<1x384xf32, #tpu.memory_space<vmem>>, vector<1x384xf32>
    %4 = vector.broadcast %3 : vector<1x384xf32> to vector<32x384xf32>
    %5 = arith.addf %2, %4 : vector<32x384xf32>
    %6 = arith.truncf %5 : vector<32x384xf32> to vector<32x384xbf16>
    %c0_5 = arith.constant 0 : index
    %c0_6 = arith.constant 0 : index
    %7 = vector.load %arg4[%c0_5, %c0_6] : memref<32x384xbf16, #tpu.memory_space<vmem>>, vector<32x384xbf16>
    tpu.vector_store %arg4[%c0_5, %c0_6], %6 {strides = array<i32>} : memref<32x384xbf16, #tpu.memory_space<vmem>>, vector<32x384xbf16>,
    return
  }
  func.func @transform_0(%arg0: i32) -> (i32, i32) {
    %c0_i32 = arith.constant 0 : i32
    %c0_i32_0 = arith.constant 0 : i32
    return %arg0, %c0_i32 : i32, i32
  }
  func.func @transform_1(%arg0: i32) -> (i32, i32) {
    %c0_i32 = arith.constant 0 : i32
    %c0_i32_0 = arith.constant 0 : i32
    %c0_i32_1 = arith.constant 0 : i32
    return %c0_i32, %c0_i32_0 : i32, i32
  }
  func.func @transform_2(%arg0: i32) -> (i32, i32) {
    %c0_i32 = arith.constant 0 : i32
    %c0_i32_0 = arith.constant 0 : i32
    %c0_i32_1 = arith.constant 0 : i32
    return %c0_i32, %c0_i32_0 : i32, i32
  }
  func.func @transform_3(%arg0: i32) -> (i32, i32) {
    %c0_i32 = arith.constant 0 : i32
    %c0_i32_0 = arith.constant 0 : i32
    return %arg0, %c0_i32 : i32, i32
  }
}

</mosaic_0001>

<llo_original>
// kernel: tpu_custom_call.1
$region0: #{tpu_custom_call.1}
  #allocation0 [shape = 'u32[]', space=smem, size = 0x4, offset = 0x4, fixed_abs, tag = 'smem constant byte address 0x4 - core index']
  #allocation1 [shape = 'u32[144,128]{1,0:T(1,128)}', space=vmem, size = 0x12000, scoped, tag = 'internal scratch']
  %s0 = inlined_call_operand.hbm [shape: bf16[32,128], index: 0, kind: input, shape index: {}]
  %s1 = inlined_call_operand.hbm [shape: bf16[128,384], index: 1, kind: input, shape index: {}]
  %s2 = inlined_call_operand.vmem [shape: f32[1,384], index: 2, kind: input, shape index: {}]
  %s3 = inlined_call_operand.hbm [shape: bf16[32,384], index: 3, kind: output, shape index: {}]
  %s4 = sld [smem:[#allocation0]]
  $region30: #{tpu_custom_call.1} parent=0
    _
  %s6 = ssub.s32 1, %s4
  %s7 = scalar_select 0, %s6, %s4
  $region1: #{tpu_custom_call.1} parent=0
    #allocation2 [shape = 'u8[8192]{0}', space=vmem, size = 0x2000, scoped, tag = 'input window, operand 0, single buffered']
    #allocation3 [shape = 's32[1]{0}', space=sflag, size = 0x4, scoped, tag = 'scoped memory for tpu_custom_call.1']
    #allocation4 [shape = 's32[1]{0}', space=sflag, size = 0x4, scoped, tag = 'scoped memory for tpu_custom_call.1']
    #allocation5 [shape = 'u8[98304]{0}', space=vmem, size = 0x18000, scoped, tag = 'input window, operand 1, single buffered']
    #allocation6 [shape = 's32[1]{0}', space=sflag, size = 0x4, scoped, tag = 'scoped memory for tpu_custom_call.1']
    #allocation7 [shape = 'u8[24576]{0}', space=vmem, size = 0x6000, scoped, tag = 'output window, operand 0, single buffered']
    %8 = vsyncpa [#allocation3], 0
    %9 = vsyncpa [#allocation6], 0
    %10 = vsyncpa [#allocation4], 0
    // Predicated region
    $region2: #{tpu_custom_call.1} parent=1 // pred_check
      _
    $region3: #{tpu_custom_call.1} parent=1 // pred_check_branch
      %12 = sbr.rel (0) target = $region5
    $region4: #{tpu_custom_call.1} parent=1 // pred_region
      %s14 = ssub.s32 256, 256
      %15 = vsyncadd [#allocation3], %s14
      %s16 = sshll.u32 [#allocation2], 4
      %s17 = int_to_ptr.vmem [resolvable:$true] %s16
      %22 = dma.hbm_to_vmem [thread:$0]  %s0, 256, %s17, [#allocation3], 64, 64, 4
    $region5: #{tpu_custom_call.1} parent=1 // pred_fallthru
      _
    // Predicated region
    $region6: #{tpu_custom_call.1} parent=1 // pred_check
      _
    $region7: #{tpu_custom_call.1} parent=1 // pred_check_branch
      %24 = sbr.rel (0) target = $region9
    $region8: #{tpu_custom_call.1} parent=1 // pred_region
      %s26 = ssub.s32 3072, 3072
      %27 = vsyncadd [#allocation6], %s26
      %s28 = sshll.u32 [#allocation5], 4
      %s29 = int_to_ptr.vmem [resolvable:$true] %s28
      %34 = dma.hbm_to_vmem [thread:$0]  %s1, 3072, %s29, [#allocation6], 192, 192, 12
    $region9: #{tpu_custom_call.1} parent=1 // pred_fallthru
      _
    // Predicated region
    $region10: #{tpu_custom_call.1} parent=1 // pred_check
      _
    $region11: #{tpu_custom_call.1} parent=1 // pred_check_branch
      %36 = sbr.rel (0) target = $region13
    $region12: #{tpu_custom_call.1} parent=1 // pred_region
      _
    $region13: #{tpu_custom_call.1} parent=1 // pred_fallthru
      _
    // Predicated region
    $region14: #{tpu_custom_call.1} parent=1 // pred_check
      _
    $region15: #{tpu_custom_call.1} parent=1 // pred_check_branch
      %38 = sbr.rel (0) target = $region17
    $region16: #{tpu_custom_call.1} parent=1 // pred_region
      %39 = dma.done [#allocation3], 256
    $region17: #{tpu_custom_call.1} parent=1 // pred_fallthru
      _
    // Predicated region
    $region18: #{tpu_custom_call.1} parent=1 // pred_check
      _
    $region19: #{tpu_custom_call.1} parent=1 // pred_check_branch
      %41 = sbr.rel (0) target = $region21
    $region20: #{tpu_custom_call.1} parent=1 // pred_region
      %42 = dma.done [#allocation6], 3072
    $region21: #{tpu_custom_call.1} parent=1 // pred_fallthru
      _
    %v44 = vld [vmem:[#allocation2] sm:$0xf]
    %v45 = vld [vmem:[#allocation2 + $0x4] sm:$0xf]
    %v46 = vld [vmem:[#allocation2 + $0x8] sm:$0xf]
    %v47 = vld [vmem:[#allocation2 + $0xc] sm:$0xf]
    %v48 = vld [vmem:[#allocation5] sm:$0xff]
    %v49 = vld [vmem:[#allocation5 + $0x8] sm:$0xf]
    %v50 = vld [vmem:[#allocation5 + $0xc] sm:$0xff]
    %v51 = vld [vmem:[#allocation5 + $0x14] sm:$0xf]
    %v52 = vld [vmem:[#allocation5 + $0x18] sm:$0xff]
    %v53 = vld [vmem:[#allocation5 + $0x20] sm:$0xf]
    %v54 = vld [vmem:[#allocation5 + $0x24] sm:$0xff]
    %v55 = vld [vmem:[#allocation5 + $0x2c] sm:$0xf]
    %v56 = vld [vmem:[#allocation5 + $0x30] sm:$0xff]
    %v57 = vld [vmem:[#allocation5 + $0x38] sm:$0xf]
    %v58 = vld [vmem:[#allocation5 + $0x3c] sm:$0xff]
    %v59 = vld [vmem:[#allocation5 + $0x44] sm:$0xf]
    %v60 = vld [vmem:[#allocation5 + $0x48] sm:$0xff]
    %v61 = vld [vmem:[#allocation5 + $0x50] sm:$0xf]
    %v62 = vld [vmem:[#allocation5 + $0x54] sm:$0xff]
    %v63 = vld [vmem:[#allocation5 + $0x5c] sm:$0xf]
    %v64 = vld [vmem:[#allocation5 + $0x60] sm:$0xff]
    %v65 = vld [vmem:[#allocation5 + $0x68] sm:$0xf]
    %v66 = vld [vmem:[#allocation5 + $0x6c] sm:$0xff]
    %v67 = vld [vmem:[#allocation5 + $0x74] sm:$0xf]
    %v68 = vld [vmem:[#allocation5 + $0x78] sm:$0xff]
    %v69 = vld [vmem:[#allocation5 + $0x80] sm:$0xf]
    %v70 = vld [vmem:[#allocation5 + $0x84] sm:$0xff]
    %v71 = vld [vmem:[#allocation5 + $0x8c] sm:$0xf]
    %v72 = vld [vmem:[#allocation5 + $0x90] sm:$0xff]
    %v73 = vld [vmem:[#allocation5 + $0x98] sm:$0xf]
    %v74 = vld [vmem:[#allocation5 + $0x9c] sm:$0xff]
    %v75 = vld [vmem:[#allocation5 + $0xa4] sm:$0xf]
    %v76 = vld [vmem:[#allocation5 + $0xa8] sm:$0xff]
    %v77 = vld [vmem:[#allocation5 + $0xb0] sm:$0xf]
    %v78 = vld [vmem:[#allocation5 + $0xb4] sm:$0xff]
    %v79 = vld [vmem:[#allocation5 + $0xbc] sm:$0xf]
    %v80 = vld [vmem:[%s2] sm:$0x7]
    %v82 = vlaneseq
    %v83 = vshrl.u32 %v82, 7
    %v84 = vsub.s32 0, %v83
    %v85 = vrot.slane %v80, %v84
    %v86 = vlaneseq
    %v87 = vshrl.u32 %v86, 7
    %v88 = vsub.s32 1, %v87
    %v89 = vrot.slane %v80, %v88
    %v90 = vlaneseq
    %v91 = vshrl.u32 %v90, 7
    %v92 = vsub.s32 2, %v91
    %v93 = vrot.slane %v80, %v92
    %v101 = vunpack.c.l.b16 %v44
    %v102 = vunpack.c.l.b16 %v45
    %v103 = vunpack.c.l.b16 %v46
    %v104 = vunpack.c.l.b16 %v47
    %v105 = vpack.c.b16 %v102, %v101
    %v106 = vpack.c.b16 %v104, %v103
    %v141 = vunpack.c.l.b16 %v48
    %v142 = vunpack.c.h.b16 %v48
    %v143 = vunpack.c.l.b16 %v49
    %v144 = vunpack.c.l.b16 %v50
    %v145 = vunpack.c.h.b16 %v50
    %v146 = vunpack.c.l.b16 %v51
    %v147 = vunpack.c.l.b16 %v52
    %v148 = vunpack.c.h.b16 %v52
    %v149 = vunpack.c.l.b16 %v53
    %v150 = vunpack.c.l.b16 %v54
    %v151 = vunpack.c.h.b16 %v54
    %v152 = vunpack.c.l.b16 %v55
    %v153 = vunpack.c.l.b16 %v56
    %v154 = vunpack.c.h.b16 %v56
    %v155 = vunpack.c.l.b16 %v57
    %v156 = vunpack.c.l.b16 %v58
    %v157 = vunpack.c.h.b16 %v58
    %v158 = vunpack.c.l.b16 %v59
    %v159 = vunpack.c.l.b16 %v60
    %v160 = vunpack.c.h.b16 %v60
    %v161 = vunpack.c.l.b16 %v61
    %v162 = vunpack.c.l.b16 %v62
    %v163 = vunpack.c.h.b16 %v62
    %v164 = vunpack.c.l.b16 %v63
    %v165 = vunpack.c.l.b16 %v64
    %v166 = vunpack.c.h.b16 %v64
    %v167 = vunpack.c.l.b16 %v65
    %v168 = vunpack.c.l.b16 %v66
    %v169 = vunpack.c.h.b16 %v66
    %v170 = vunpack.c.l.b16 %v67
    %v171 = vunpack.c.l.b16 %v68
    %v172 = vunpack.c.h.b16 %v68
    %v173 = vunpack.c.l.b16 %v69
    %v174 = vunpack.c.l.b16 %v70
    %v175 = vunpack.c.h.b16 %v70
    %v176 = vunpack.c.l.b16 %v71
    %v177 = vunpack.c.l.b16 %v72
    %v178 = vunpack.c.h.b16 %v72
    %v179 = vunpack.c.l.b16 %v73
    %v180 = vunpack.c.l.b16 %v74
    %v181 = vunpack.c.h.b16 %v74
    %v182 = vunpack.c.l.b16 %v75
    %v183 = vunpack.c.l.b16 %v76
    %v184 = vunpack.c.h.b16 %v76
    %v185 = vunpack.c.l.b16 %v77
    %v186 = vunpack.c.l.b16 %v78
    %v187 = vunpack.c.h.b16 %v78
    %v188 = vunpack.c.l.b16 %v79
    %v189 = vpack.c.b16 %v144, %v141
    %v190 = vpack.c.b16 %v145, %v142
    %v191 = vpack.c.b16 %v146, %v143
    %v192 = vpack.c.b16 %v150, %v147
    %v193 = vpack.c.b16 %v151, %v148
    %v194 = vpack.c.b16 %v152, %v149
    %v195 = vpack.c.b16 %v156, %v153
    %v196 = vpack.c.b16 %v157, %v154
    %v197 = vpack.c.b16 %v158, %v155
    %v198 = vpack.c.b16 %v162, %v159
    %v199 = vpack.c.b16 %v163, %v160
    %v200 = vpack.c.b16 %v164, %v161
    %v201 = vpack.c.b16 %v168, %v165
    %v202 = vpack.c.b16 %v169, %v166
    %v203 = vpack.c.b16 %v170, %v167
    %v204 = vpack.c.b16 %v174, %v171
    %v205 = vpack.c.b16 %v175, %v172
    %v206 = vpack.c.b16 %v176, %v173
    %v207 = vpack.c.b16 %v180, %v177
    %v208 = vpack.c.b16 %v181, %v178
    %v209 = vpack.c.b16 %v182, %v179
    %v210 = vpack.c.b16 %v186, %v183
    %v211 = vpack.c.b16 %v187, %v184
    %v212 = vpack.c.b16 %v188, %v185
    %237 = vmatprep.subr.bf16.mxu0 %v190
    %238 = vmatpush1.bf16.msra.mxu0 %v189
    %239 = vmatprep.subr.bf16.mxu0 %v193
    %240 = vmatpush1.bf16.msra.mxu0 %v192
    %241 = vmatprep.subr.bf16.mxu0 %v196
    %242 = vmatpush1.bf16.msra.mxu0 %v195
    %243 = vmatprep.subr.bf16.mxu0 %v199
    %244 = vmatpush1.bf16.msra.mxu0 %v198
    %245 = vmatprep.subr.bf16.mxu0 %v202
    %246 = vmatpush1.bf16.msra.mxu0 %v201
    %247 = vmatprep.subr.bf16.mxu0 %v205
    %248 = vmatpush1.bf16.msra.mxu0 %v204
    %249 = vmatprep.subr.bf16.mxu0 %v208
    %250 = vmatpush1.bf16.msra.mxu0 %v207
    %251 = vmatprep.subr.bf16.mxu0 %v211
    %252 = vmatpush1.bf16.msra.mxu0 %v210
    %253 = vmatprep.subr.bf16.mxu0 0
    %254 = vmatpush1.bf16.msra.mxu0 0
    %255 = vmatprep.subr.bf16.mxu0 0
    %256 = vmatpush1.bf16.msra.mxu0 0
    %257 = vmatprep.subr.bf16.mxu0 0
    %258 = vmatpush1.bf16.msra.mxu0 0
    %259 = vmatprep.subr.bf16.mxu0 0
    %260 = vmatpush1.bf16.msra.mxu0 0
    %261 = vmatprep.subr.bf16.mxu0 0
    %262 = vmatpush1.bf16.msra.mxu0 0
    %263 = vmatprep.subr.bf16.mxu0 0
    %264 = vmatpush1.bf16.msra.mxu0 0
    %265 = vmatprep.subr.bf16.mxu0 0
    %266 = vmatpush1.bf16.msra.mxu0 0
    %267 = vmatprep.subr.bf16.mxu0 0
    %268 = vmatpush1.bf16.msra.mxu0 0
    %269 = vmatprep.mubr.bf16.mxu0 0
    %270 = vmatmul.mubr.bf16.gmra.mrb[0].mxu0 %v105
    %v271 = vpop.f32.mrb[0].mxu0
    %v272 = vadd.f32 %v85, %v271
    %v273 = vpop.f32.mrb[0].mxu0
    %v274 = vadd.f32 %v89, %v273
    %v275 = vpop.f32.mrb[0].mxu0
    %v276 = vadd.f32 %v85, %v275
    %v277 = vpop.f32.mrb[0].mxu0
    %v278 = vadd.f32 %v89, %v277
    %279 = vmatprep.mubr.bf16.mxu0 0
    %280 = vmatmul.mubr.bf16.gmra.mrb[0].mxu0 %v106
    %v281 = vpop.f32.mrb[0].mxu0
    %v282 = vadd.f32 %v85, %v281
    %v283 = vpop.f32.mrb[0].mxu0
    %v284 = vadd.f32 %v89, %v283
    %v285 = vpop.f32.mrb[0].mxu0
    %v286 = vadd.f32 %v85, %v285
    %v287 = vpop.f32.mrb[0].mxu0
    %v288 = vadd.f32 %v89, %v287
    %289 = vdwg.mxu0
    %290 = vmatprep.subr.bf16.mxu0 0
    %291 = vmatpush1.bf16.msra.mxu0 %v191
    %292 = vmatprep.subr.bf16.mxu0 0
    %293 = vmatpush1.bf16.msra.mxu0 %v194
    %294 = vmatprep.subr.bf16.mxu0 0
    %295 = vmatpush1.bf16.msra.mxu0 %v197
    %296 = vmatprep.subr.bf16.mxu0 0
    %297 = vmatpush1.bf16.msra.mxu0 %v200
    %298 = vmatprep.subr.bf16.mxu0 0
    %299 = vmatpush1.bf16.msra.mxu0 %v203
    %300 = vmatprep.subr.bf16.mxu0 0
    %301 = vmatpush1.bf16.msra.mxu0 %v206
    %302 = vmatprep.subr.bf16.mxu0 0
    %303 = vmatpush1.bf16.msra.mxu0 %v209
    %304 = vmatprep.subr.bf16.mxu0 0
    %305 = vmatpush1.bf16.msra.mxu0 %v212
    %306 = vmatprep.subr.bf16.mxu0 0
    %307 = vmatpush1.bf16.msra.mxu0 0
    %308 = vmatprep.subr.bf16.mxu0 0
    %309 = vmatpush1.bf16.msra.mxu0 0
    %310 = vmatprep.subr.bf16.mxu0 0
    %311 = vmatpush1.bf16.msra.mxu0 0
    %312 = vmatprep.subr.bf16.mxu0 0
    %313 = vmatpush1.bf16.msra.mxu0 0
    %314 = vmatprep.subr.bf16.mxu0 0
    %315 = vmatpush1.bf16.msra.mxu0 0
    %316 = vmatprep.subr.bf16.mxu0 0
    %317 = vmatpush1.bf16.msra.mxu0 0
    %318 = vmatprep.subr.bf16.mxu0 0
    %319 = vmatpush1.bf16.msra.mxu0 0
    %320 = vmatprep.subr.bf16.mxu0 0
    %321 = vmatpush1.bf16.msra.mxu0 0
    %322 = vmatprep.mubr.bf16.mxu0 0
    %323 = vmatmul.mubr.bf16.gmra.mrb[0].mxu0 %v105
    %v324 = vpop.f32.mrb[0].mxu0
    %v325 = vadd.f32 %v93, %v324
    %v326 = vpop.f32.mrb[0].mxu0
    %v327 = vpop.f32.mrb[0].mxu0
    %v328 = vadd.f32 %v93, %v327
    %v329 = vpop.f32.mrb[0].mxu0
    %330 = vmatprep.mubr.bf16.mxu0 0
    %331 = vmatmul.mubr.bf16.gmra.mrb[0].mxu0 %v106
    %v332 = vpop.f32.mrb[0].mxu0
    %v333 = vadd.f32 %v93, %v332
    %v334 = vpop.f32.mrb[0].mxu0
    %v335 = vpop.f32.mrb[0].mxu0
    %v336 = vadd.f32 %v93, %v335
    %v337 = vpop.f32.mrb[0].mxu0
    %338 = vdwg.mxu0
    %v339 = vpack.c.bf16 %v276, %v272
    %v340 = vpack.c.bf16 %v278, %v274
    %v341 = vpack.c.bf16 %v328, %v325
    %v342 = vpack.c.bf16 %v286, %v282
    %v343 = vpack.c.bf16 %v288, %v284
    %v344 = vpack.c.bf16 %v336, %v333
    %v351 = vunpack.c.l.b16 %v339
    %v352 = vunpack.c.l.b16 %v340
    %v353 = vunpack.c.l.b16 %v341
    %v354 = vunpack.c.h.b16 %v339
    %v355 = vunpack.c.h.b16 %v340
    %v356 = vunpack.c.h.b16 %v341
    %v357 = vunpack.c.l.b16 %v342
    %v358 = vunpack.c.l.b16 %v343
    %v359 = vunpack.c.l.b16 %v344
    %v360 = vunpack.c.h.b16 %v342
    %v361 = vunpack.c.h.b16 %v343
    %v362 = vunpack.c.h.b16 %v344
    %v363 = vpack.c.b16 %v352, %v351
    %v364 = vpack.c.b16 %v353, %v353
    %v365 = vpack.c.b16 %v355, %v354
    %v366 = vpack.c.b16 %v356, %v356
    %v367 = vpack.c.b16 %v358, %v357
    %v368 = vpack.c.b16 %v359, %v359
    %v369 = vpack.c.b16 %v361, %v360
    %v370 = vpack.c.b16 %v362, %v362
    %379 = vst [vmem:[#allocation7] sm:$0xff] %v363
    %380 = vst [vmem:[#allocation7 + $0x8] sm:$0xf] %v364
    %381 = vst [vmem:[#allocation7 + $0xc] sm:$0xff] %v365
    %382 = vst [vmem:[#allocation7 + $0x14] sm:$0xf] %v366
    %383 = vst [vmem:[#allocation7 + $0x18] sm:$0xff] %v367
    %384 = vst [vmem:[#allocation7 + $0x20] sm:$0xf] %v368
    %385 = vst [vmem:[#allocation7 + $0x24] sm:$0xff] %v369
    %386 = vst [vmem:[#allocation7 + $0x2c] sm:$0xf] %v370
    // Predicated region
    $region22: #{tpu_custom_call.1} parent=1 // pred_check
      _
    $region23: #{tpu_custom_call.1} parent=1 // pred_check_branch
      %388 = sbr.rel (0) target = $region25
    $region24: #{tpu_custom_call.1} parent=1 // pred_region
      %s390 = ssub.s32 768, 768
      %391 = vsyncadd [#allocation4], %s390
      %s392 = sshll.u32 [#allocation7], 4
      %s393 = int_to_ptr.vmem [resolvable:$true] %s392
      %398 = dma.vmem_to_hbm [thread:$0]  %s393, 768, %s3, [#allocation4], 192, 192, 12
    $region25: #{tpu_custom_call.1} parent=1 // pred_fallthru
      _
    // Predicated region
    $region26: #{tpu_custom_call.1} parent=1 // pred_check
      _
    $region27: #{tpu_custom_call.1} parent=1 // pred_check_branch
      %400 = sbr.rel (0) target = $region29
    $region28: #{tpu_custom_call.1} parent=1 // pred_region
      %401 = dma.done [#allocation4], 768
    $region29: #{tpu_custom_call.1} parent=1 // pred_fallthru
      _
    %402 = vsyncpa [#allocation3], 1
    %403 = vsyncpa [#allocation6], 1
    %404 = vsyncpa [#allocation4], 1

</llo_original>
